<compile_context>
chip_gen: v6e
topology: v6e:2x2x1
jax: 0.10.0
libtpu: 0.0.40
codegen_flags: <defaults>
</compile_context>

<pallas_src>
import math

import jax
import jax.numpy as jnp
from jax.experimental import pallas as pl
from jax.experimental.pallas import tpu as pltpu


def _dwconv_kernel(x_ref, w_ref, b_ref, out_ref):
    # x_ref:   (1, H+2, W+2, Ct)  one spatially pre-padded image, one channel slab
    # w_ref:   (9, Ct)            depthwise taps, row k = (dy*3 + dx), channels-last
    # b_ref:   (1, Ct)            bias
    # out_ref: (1, H, W, Ct)
    _, H, W, Ct = out_ref.shape

    x = x_ref[0].astype(jnp.float32)            # (H+2, W+2, Ct)
    w = w_ref[...].astype(jnp.float32)          # (9, Ct)
    bias = b_ref[...].astype(jnp.float32).reshape(1, 1, Ct)

    acc = jnp.broadcast_to(bias, (H, W, Ct))
    # 3x3 depthwise conv = 9 shifted elementwise multiply-accumulates (VPU).
    for dy in range(3):
        for dx in range(3):
            tap = w[dy * 3 + dx].reshape(1, 1, Ct)
            acc = acc + x[dy:dy + H, dx:dx + W, :] * tap

    out_ref[0] = acc.astype(out_ref.dtype)


def dwconv(x, conv_w, conv_b, H, W, *, tile_c=128):
    """Depthwise 3x3 conv, stride 1, pad 1, groups=C, with bias.

    x:       (B, N, C) with N = H*W        (matches the PyTorch module input)
    conv_w:  (C, 1, 3, 3)                  (PyTorch depthwise Conv2d weight)
    conv_b:  (C,)
    returns: (B, N, C)
    """
    B, N, C = x.shape
    assert N == H * W, "N must equal H*W"
    kh = kw = 3

    # (B, N, C) -> NHWC image; identical element mapping to the PyTorch
    # transpose(1,2).view(B,C,H,W) followed by NCHW conv.
    x_img = x.reshape(B, H, W, C)
    x_pad = jnp.pad(x_img, ((0, 0), (1, 1), (1, 1), (0, 0)))   # spatial zero-pad
    Hp, Wp = H + 2, W + 2

    # Lane-dense channels: pad C up to a multiple of 128 (== tile_c multiple).
    Cp = ((C + tile_c - 1) // tile_c) * tile_c
    pad_c = Cp - C
    if pad_c:
        x_pad = jnp.pad(x_pad, ((0, 0), (0, 0), (0, 0), (0, pad_c)))

    # (C, 1, 3, 3) -> (9, Cp) with row k = (dy*3 + dx), channels last.
    w_flat = conv_w.reshape(C, kh * kw).T                      # (9, C)
    w_flat = jnp.pad(w_flat, ((0, 0), (0, pad_c)))             # (9, Cp)
    b_row = jnp.pad(conv_b.reshape(1, C), ((0, 0), (0, pad_c)))  # (1, Cp)

    n_ctiles = Cp // tile_c
    grid = (B, n_ctiles)

    itemsize = jnp.dtype(x.dtype).itemsize
    cost = pl.CostEstimate(
        flops=2 * B * H * W * Cp * kh * kw,
        transcendentals=0,
        bytes_accessed=(B * Hp * Wp * Cp + kh * kw * Cp + Cp + B * H * W * Cp)
        * itemsize,
    )

    out = pl.pallas_call(
        _dwconv_kernel,
        out_shape=jax.ShapeDtypeStruct((B, H, W, Cp), x.dtype),
        grid_spec=pltpu.PrefetchScalarGridSpec(
            num_scalar_prefetch=0,
            grid=grid,
            in_specs=[
                pl.BlockSpec((1, Hp, Wp, tile_c), lambda b, c: (b, 0, 0, c)),
                pl.BlockSpec((kh * kw, tile_c), lambda b, c: (0, c)),
                pl.BlockSpec((1, tile_c), lambda b, c: (0, c)),
            ],
            out_specs=pl.BlockSpec((1, H, W, tile_c), lambda b, c: (b, 0, 0, c)),
        ),
        compiler_params=pltpu.CompilerParams(
            dimension_semantics=("parallel", "parallel"),
            vmem_limit_bytes=64 * 1024 * 1024,
        ),
        cost_estimate=cost,
    )(x_pad, w_flat, b_row)

    out = out[..., :C]                        # drop channel padding (zeros)
    return out.reshape(B, H * W, C)


def _reference(x, conv_w, conv_b, H, W):
    """Plain-JAX reference (matches PyTorch nn.Conv2d(groups=C))."""
    B, N, C = x.shape
    xi = x.reshape(B, H, W, C).transpose(0, 3, 1, 2)            # NCHW
    y = jax.lax.conv_general_dilated(
        xi, conv_w, window_strides=(1, 1), padding=((1, 1), (1, 1)),
        dimension_numbers=("NCHW", "OIHW", "NCHW"),
        feature_group_count=C)
    y = y + conv_b[None, :, None, None]
    return y.reshape(B, C, H * W).transpose(0, 2, 1)            # (B, N, C)


if __name__ == "__main__":
    # Small shapes consistent with the module: B=2, hidden C=32, H=W=8 (N=64).
    B, C, H, W = 2, 32, 8, 8

    key = jax.random.PRNGKey(0)
    kx, kw, kb = jax.random.split(key, 3)

    x = jax.random.normal(kx, (B, H * W, C), dtype=jnp.float32)

    # Deterministic init mirroring _init_weights for a depthwise conv:
    # fan_out = kh*kw*out_channels / groups = 9; weight ~ N(0, sqrt(2/fan_out)).
    fan_out = 3 * 3 * C // C
    conv_w = jax.random.normal(kw, (C, 1, 3, 3), dtype=jnp.float32) * math.sqrt(
        2.0 / fan_out)
    conv_b = jax.random.normal(kb, (C,), dtype=jnp.float32) * 0.1

    out = dwconv(x, conv_w, conv_b, H, W)
    out = jax.block_until_ready(out)

    ref = _reference(x, conv_w, conv_b, H, W)
    assert out.shape == (B, H * W, C)
    assert jnp.allclose(out, ref, atol=1e-4, rtol=1e-4), float(
        jnp.max(jnp.abs(out - ref)))

    print("KERNEL_OK")
</pallas_src>

<mosaic_0001>
module attributes {stable_mosaic.version = 11 : i64} {
  func.func @_dwconv_kernel(%arg0: i32, %arg1: i32, %arg2: memref<1x10x10x128xf32, #tpu.memory_space<vmem>>, %arg3: memref<9x128xf32, #tpu.memory_space<vmem>>, %arg4: memref<1x128xf32, #tpu.memory_space<vmem>>, %arg5: memref<1x8x8x128xf32, #tpu.memory_space<vmem>>) attributes {dimension_semantics = [#tpu.dimension_semantics<parallel>, #tpu.dimension_semantics<parallel>], iteration_bounds = array<i64: 2, 1>, scalar_prefetch = 0 : i64, scratch_operands = 0 : i64, tpu.core_type = #tpu.core_type<tc>, window_params = [{transform_indices = @transform_0, window_bounds = array<i64: 1, 10, 10, 128>}, {transform_indices = @transform_1, window_bounds = array<i64: 9, 128>}, {transform_indices = @transform_2, window_bounds = array<i64: 1, 128>}, {transform_indices = @transform_3, window_bounds = array<i64: 1, 8, 8, 128>}]} {
    %c0 = arith.constant 0 : index
    %c0_0 = arith.constant 0 : index
    %c0_1 = arith.constant 0 : index
    %c0_2 = arith.constant 0 : index
    %0 = vector.load %arg2[%c0, %c0_0, %c0_1, %c0_2] : memref<1x10x10x128xf32, #tpu.memory_space<vmem>>, vector<1x10x10x128xf32>
    %1 = vector.shape_cast %0 : vector<1x10x10x128xf32> to vector<10x10x128xf32>
    %c0_3 = arith.constant 0 : index
    %c0_4 = arith.constant 0 : index
    %2 = vector.load %arg3[%c0_3, %c0_4] : memref<9x128xf32, #tpu.memory_space<vmem>>, vector<9x128xf32>
    %c0_5 = arith.constant 0 : index
    %c0_6 = arith.constant 0 : index
    %3 = vector.load %arg4[%c0_5, %c0_6] : memref<1x128xf32, #tpu.memory_space<vmem>>, vector<1x128xf32>
    %4 = vector.shape_cast %3 : vector<1x128xf32> to vector<1x1x128xf32>
    %5 = vector.shape_cast %4 : vector<1x1x128xf32> to vector<1x1x128xf32>
    %6 = vector.broadcast %5 : vector<1x1x128xf32> to vector<8x8x128xf32>
    %7 = vector.extract_strided_slice %2 {offsets = [0, 0], sizes = [1, 128], strides = [1, 1]} : vector<9x128xf32> to vector<1x128xf32>
    %8 = vector.shape_cast %7 : vector<1x128xf32> to vector<128xf32>
    %9 = vector.shape_cast %8 : vector<128xf32> to vector<1x1x128xf32>
    %10 = vector.extract_strided_slice %1 {offsets = [0, 0, 0], sizes = [8, 8, 128], strides = [1, 1, 1]} : vector<10x10x128xf32> to vector<8x8x128xf32>
    %11 = vector.broadcast %9 : vector<1x1x128xf32> to vector<8x8x128xf32>
    %12 = arith.mulf %10, %11 : vector<8x8x128xf32>
    %13 = arith.addf %6, %12 : vector<8x8x128xf32>
    %14 = vector.extract_strided_slice %2 {offsets = [1, 0], sizes = [1, 128], strides = [1, 1]} : vector<9x128xf32> to vector<1x128xf32>
    %15 = vector.shape_cast %14 : vector<1x128xf32> to vector<128xf32>
    %16 = vector.shape_cast %15 : vector<128xf32> to vector<1x1x128xf32>
    %17 = vector.extract_strided_slice %1 {offsets = [0, 1, 0], sizes = [8, 8, 128], strides = [1, 1, 1]} : vector<10x10x128xf32> to vector<8x8x128xf32>
    %18 = vector.broadcast %16 : vector<1x1x128xf32> to vector<8x8x128xf32>
    %19 = arith.mulf %17, %18 : vector<8x8x128xf32>
    %20 = arith.addf %13, %19 : vector<8x8x128xf32>
    %21 = vector.extract_strided_slice %2 {offsets = [2, 0], sizes = [1, 128], strides = [1, 1]} : vector<9x128xf32> to vector<1x128xf32>
    %22 = vector.shape_cast %21 : vector<1x128xf32> to vector<128xf32>
    %23 = vector.shape_cast %22 : vector<128xf32> to vector<1x1x128xf32>
    %24 = vector.extract_strided_slice %1 {offsets = [0, 2, 0], sizes = [8, 8, 128], strides = [1, 1, 1]} : vector<10x10x128xf32> to vector<8x8x128xf32>
    %25 = vector.broadcast %23 : vector<1x1x128xf32> to vector<8x8x128xf32>
    %26 = arith.mulf %24, %25 : vector<8x8x128xf32>
    %27 = arith.addf %20, %26 : vector<8x8x128xf32>
    %28 = vector.extract_strided_slice %2 {offsets = [3, 0], sizes = [1, 128], strides = [1, 1]} : vector<9x128xf32> to vector<1x128xf32>
    %29 = vector.shape_cast %28 : vector<1x128xf32> to vector<128xf32>
    %30 = vector.shape_cast %29 : vector<128xf32> to vector<1x1x128xf32>
    %31 = vector.extract_strided_slice %1 {offsets = [1, 0, 0], sizes = [8, 8, 128], strides = [1, 1, 1]} : vector<10x10x128xf32> to vector<8x8x128xf32>
    %32 = vector.broadcast %30 : vector<1x1x128xf32> to vector<8x8x128xf32>
    %33 = arith.mulf %31, %32 : vector<8x8x128xf32>
    %34 = arith.addf %27, %33 : vector<8x8x128xf32>
    %35 = vector.extract_strided_slice %2 {offsets = [4, 0], sizes = [1, 128], strides = [1, 1]} : vector<9x128xf32> to vector<1x128xf32>
    %36 = vector.shape_cast %35 : vector<1x128xf32> to vector<128xf32>
    %37 = vector.shape_cast %36 : vector<128xf32> to vector<1x1x128xf32>
    %38 = vector.extract_strided_slice %1 {offsets = [1, 1, 0], sizes = [8, 8, 128], strides = [1, 1, 1]} : vector<10x10x128xf32> to vector<8x8x128xf32>
    %39 = vector.broadcast %37 : vector<1x1x128xf32> to vector<8x8x128xf32>
    %40 = arith.mulf %38, %39 : vector<8x8x128xf32>
    %41 = arith.addf %34, %40 : vector<8x8x128xf32>
    %42 = vector.extract_strided_slice %2 {offsets = [5, 0], sizes = [1, 128], strides = [1, 1]} : vector<9x128xf32> to vector<1x128xf32>
    %43 = vector.shape_cast %42 : vector<1x128xf32> to vector<128xf32>
    %44 = vector.shape_cast %43 : vector<128xf32> to vector<1x1x128xf32>
    %45 = vector.extract_strided_slice %1 {offsets = [1, 2, 0], sizes = [8, 8, 128], strides = [1, 1, 1]} : vector<10x10x128xf32> to vector<8x8x128xf32>
    %46 = vector.broadcast %44 : vector<1x1x128xf32> to vector<8x8x128xf32>
    %47 = arith.mulf %45, %46 : vector<8x8x128xf32>
    %48 = arith.addf %41, %47 : vector<8x8x128xf32>
    %49 = vector.extract_strided_slice %2 {offsets = [6, 0], sizes = [1, 128], strides = [1, 1]} : vector<9x128xf32> to vector<1x128xf32>
    %50 = vector.shape_cast %49 : vector<1x128xf32> to vector<128xf32>
    %51 = vector.shape_cast %50 : vector<128xf32> to vector<1x1x128xf32>
    %52 = vector.extract_strided_slice %1 {offsets = [2, 0, 0], sizes = [8, 8, 128], strides = [1, 1, 1]} : vector<10x10x128xf32> to vector<8x8x128xf32>
    %53 = vector.broadcast %51 : vector<1x1x128xf32> to vector<8x8x128xf32>
    %54 = arith.mulf %52, %53 : vector<8x8x128xf32>
    %55 = arith.addf %48, %54 : vector<8x8x128xf32>
    %56 = vector.extract_strided_slice %2 {offsets = [7, 0], sizes = [1, 128], strides = [1, 1]} : vector<9x128xf32> to vector<1x128xf32>
    %57 = vector.shape_cast %56 : vector<1x128xf32> to vector<128xf32>
    %58 = vector.shape_cast %57 : vector<128xf32> to vector<1x1x128xf32>
    %59 = vector.extract_strided_slice %1 {offsets = [2, 1, 0], sizes = [8, 8, 128], strides = [1, 1, 1]} : vector<10x10x128xf32> to vector<8x8x128xf32>
    %60 = vector.broadcast %58 : vector<1x1x128xf32> to vector<8x8x128xf32>
    %61 = arith.mulf %59, %60 : vector<8x8x128xf32>
    %62 = arith.addf %55, %61 : vector<8x8x128xf32>
    %63 = vector.extract_strided_slice %2 {offsets = [8, 0], sizes = [1, 128], strides = [1, 1]} : vector<9x128xf32> to vector<1x128xf32>
    %64 = vector.shape_cast %63 : vector<1x128xf32> to vector<128xf32>
    %65 = vector.shape_cast %64 : vector<128xf32> to vector<1x1x128xf32>
    %66 = vector.extract_strided_slice %1 {offsets = [2, 2, 0], sizes = [8, 8, 128], strides = [1, 1, 1]} : vector<10x10x128xf32> to vector<8x8x128xf32>
    %67 = vector.broadcast %65 : vector<1x1x128xf32> to vector<8x8x128xf32>
    %68 = arith.mulf %66, %67 : vector<8x8x128xf32>
    %69 = arith.addf %62, %68 : vector<8x8x128xf32>
    %c0_7 = arith.constant 0 : index
    %c0_8 = arith.constant 0 : index
    %c0_9 = arith.constant 0 : index
    %c0_10 = arith.constant 0 : index
    %70 = vector.load %arg5[%c0_7, %c0_8, %c0_9, %c0_10] : memref<1x8x8x128xf32, #tpu.memory_space<vmem>>, vector<1x8x8x128xf32>
    %71 = vector.shape_cast %70 : vector<1x8x8x128xf32> to vector<8x8x128xf32>
    %72 = vector.shape_cast %69 : vector<8x8x128xf32> to vector<1x8x8x128xf32>
    tpu.vector_store %arg5[%c0_7, %c0_8, %c0_9, %c0_10], %72 {strides = array<i32>} : memref<1x8x8x128xf32, #tpu.memory_space<vmem>>, vector<1x8x8x128xf32>,
    return
  }
  func.func @transform_0(%arg0: i32, %arg1: i32) -> (i32, i32, i32, i32) {
    %c0_i32 = arith.constant 0 : i32
    %c0_i32_0 = arith.constant 0 : i32
    %c0_i32_1 = arith.constant 0 : i32
    return %arg0, %c0_i32, %c0_i32_0, %arg1 : i32, i32, i32, i32
  }
  func.func @transform_1(%arg0: i32, %arg1: i32) -> (i32, i32) {
    %c0_i32 = arith.constant 0 : i32
    %c0_i32_0 = arith.constant 0 : i32
    return %c0_i32, %arg1 : i32, i32
  }
  func.func @transform_2(%arg0: i32, %arg1: i32) -> (i32, i32) {
    %c0_i32 = arith.constant 0 : i32
    %c0_i32_0 = arith.constant 0 : i32
    return %c0_i32, %arg1 : i32, i32
  }
  func.func @transform_3(%arg0: i32, %arg1: i32) -> (i32, i32, i32, i32) {
    %c0_i32 = arith.constant 0 : i32
    %c0_i32_0 = arith.constant 0 : i32
    %c0_i32_1 = arith.constant 0 : i32
    return %arg0, %c0_i32, %c0_i32_0, %arg1 : i32, i32, i32, i32
  }
}

</mosaic_0001>

<llo_original>
// kernel: tpu_custom_call.1
$region0: #{tpu_custom_call.1}
  #allocation0 [shape = 'u32[]', space=smem, size = 0x4, offset = 0x4, fixed_abs, tag = 'smem constant byte address 0x4 - core index']
  #allocation1 [shape = 'u32[144,128]{1,0:T(1,128)}', space=vmem, size = 0x12000, scoped, tag = 'internal scratch']
  %s0 = inlined_call_operand.vmem [shape: f32[2,10,10,128], index: 0, kind: input, shape index: {}]
  %s1 = inlined_call_operand.vmem [shape: f32[9,128], index: 1, kind: input, shape index: {}]
  %s2 = inlined_call_operand.vmem [shape: f32[1,128], index: 2, kind: input, shape index: {}]
  %s3 = inlined_call_operand.hbm [shape: f32[2,8,8,128], index: 3, kind: output, shape index: {}]
  %s4 = sld [smem:[#allocation0]]
  $region45: #{tpu_custom_call.1} parent=0
    _
  %s6 = ssub.s32 1, %s4
  %s7 = scalar_select 0, %s6, %s4
  $region1: #{tpu_custom_call.1} parent=0
    #allocation2 [shape = 'u8[65536]{0}', space=vmem, size = 0x10000, scoped, tag = 'output window, operand 0']
    #allocation3 [shape = 's32[2]{0}', space=sflag, size = 0x8, scoped, tag = 'scoped memory for tpu_custom_call.1']
    %8 = vsyncpa [#allocation3], 0
    %s9 = scalar_lea.sflag [#allocation3], 1
    %10 = vsyncpa %s9, 0
    loop: start=0, step=1, limit=4
    $region2: #{tpu_custom_call.1} parent=1 // loop_pre_header
      _
    $region3: #{tpu_custom_call.1} parent=1 // loop_header
      %s12 = sphi 0, %s16
      %p13 = scmp.ge.s32.totalorder %s12, 4
      %s19 = sphi 0, %s31
      %s20 = sphi 0, %s27
      %s21 = sphi 0, %s19
      %s22 = sphi 0, %s20
      %s23 = sphi 0, %s21
      %s24 = sphi 0, %s22
      %s36 = sphi 0, %s38
      %s39 = sphi 0, %s36
      %s40 = sphi 0, %s39
      %s56 = sphi 0, %s40
      %s62 = sphi 0, %s64
      %s65 = sphi 0, %s62
      %s66 = sphi 0, %s65
      %s82 = sphi 0, %s66
      %s88 = sphi 0, %s90
      %s91 = sphi 0, %s88
      %s92 = sphi 0, %s91
      %s108 = sphi 0, %s92
      %s116 = sphi 0, %s118
      %s119 = sphi 0, %s116
      %s120 = sphi 0, %s119
      %s136 = sphi 0, %s120
    $region4: #{tpu_custom_call.1} parent=1 // loop_header_branch
      %15 = sbr.rel (%p13) target = $region8
    $region5: #{tpu_custom_call.1} parent=1 // loop_body
      %s17 = ssub.s32 %s12, 1
      %s18 = ssub.s32 %s12, 2
      %s25 = sadd.s32 1, %s20
      %p26 = scmp.ge.s32.totalorder %s25, 1
      %s27 = scalar_select %p26, 0, %s25
      %s28 = sadd.s32 1, %s19
      %s29 = scalar_select %p26, %s28, %s19
      %p30 = scmp.ge.s32.totalorder %s29, 2
      %s31 = scalar_select %p30, 0, %s29
      %s32 = ssub.s32 %s19, %s31
      %s33 = ssub.s32 %s20, %s27
      %s34 = sor.u32 %s32, %s33
      %p35 = scmp.eq.s32.totalorder %s34, 0
      %s37 = sadd.s32 %s36, 1
      %s38 = scalar_select %p35, %s36, %s37
      %p41 = pneg %p35
      %p42 = scmp.eq.s32.totalorder %s12, 1
      %p43 = por %p41, %p42
      %p44 = scmp.ne.s32.totalorder %s36, %s39
      %p45 = scmp.eq.s32.totalorder %s12, 0
      %p46 = por %p44, %p45
      %p47 = scmp.ne.s32.totalorder %s36, %s39
      %p48 = scmp.eq.s32.totalorder %s17, 1
      %p49 = por %p47, %p48
      %p50 = scmp.ne.s32.totalorder %s39, %s40
      %p51 = scmp.eq.s32.totalorder %s17, 0
      %p52 = por %p50, %p51
      %p53 = scmp.ne.s32.totalorder %s39, %s40
      %p54 = scmp.eq.s32.totalorder %s18, 1
      %p55 = por %p53, %p54
      %p57 = scmp.ne.s32.totalorder %s40, %s56
      %p58 = scmp.eq.s32.totalorder %s18, 0
      %p59 = por %p57, %p58
      %s60 = ssub.s32 %s20, %s27
      %p61 = scmp.eq.s32.totalorder %s60, 0
      %s63 = sadd.s32 %s62, 1
      %s64 = scalar_select %p61, %s62, %s63
      %p67 = pneg %p61
      %p68 = scmp.eq.s32.totalorder %s12, 1
      %p69 = por %p67, %p68
      %p70 = scmp.ne.s32.totalorder %s62, %s65
      %p71 = scmp.eq.s32.totalorder %s12, 0
      %p72 = por %p70, %p71
      %p73 = scmp.ne.s32.totalorder %s62, %s65
      %p74 = scmp.eq.s32.totalorder %s17, 1
      %p75 = por %p73, %p74
      %p76 = scmp.ne.s32.totalorder %s65, %s66
      %p77 = scmp.eq.s32.totalorder %s17, 0
      %p78 = por %p76, %p77
      %p79 = scmp.ne.s32.totalorder %s65, %s66
      %p80 = scmp.eq.s32.totalorder %s18, 1
      %p81 = por %p79, %p80
      %p83 = scmp.ne.s32.totalorder %s66, %s82
      %p84 = scmp.eq.s32.totalorder %s18, 0
      %p85 = por %p83, %p84
      %s86 = ssub.s32 %s20, %s27
      %p87 = scmp.eq.s32.totalorder %s86, 0
      %s89 = sadd.s32 %s88, 1
      %s90 = scalar_select %p87, %s88, %s89
      %p93 = pneg %p87
      %p94 = scmp.eq.s32.totalorder %s12, 1
      %p95 = por %p93, %p94
      %p96 = scmp.ne.s32.totalorder %s88, %s91
      %p97 = scmp.eq.s32.totalorder %s12, 0
      %p98 = por %p96, %p97
      %p99 = scmp.ne.s32.totalorder %s88, %s91
      %p100 = scmp.eq.s32.totalorder %s17, 1
      %p101 = por %p99, %p100
      %p102 = scmp.ne.s32.totalorder %s91, %s92
      %p103 = scmp.eq.s32.totalorder %s17, 0
      %p104 = por %p102, %p103
      %p105 = scmp.ne.s32.totalorder %s91, %s92
      %p106 = scmp.eq.s32.totalorder %s18, 1
      %p107 = por %p105, %p106
      %p109 = scmp.ne.s32.totalorder %s92, %s108
      %p110 = scmp.eq.s32.totalorder %s18, 0
      %p111 = por %p109, %p110
      %s112 = ssub.s32 %s19, %s31
      %s113 = ssub.s32 %s20, %s27
      %s114 = sor.u32 %s112, %s113
      %p115 = scmp.eq.s32.totalorder %s114, 0
      %s117 = sadd.s32 %s116, 1
      %s118 = scalar_select %p115, %s116, %s117
      %p121 = pneg %p115
      %p122 = scmp.eq.s32.totalorder %s12, 1
      %p123 = por %p121, %p122
      %p124 = scmp.ne.s32.totalorder %s116, %s119
      %p125 = scmp.eq.s32.totalorder %s12, 0
      %p126 = por %p124, %p125
      %p127 = scmp.ne.s32.totalorder %s116, %s119
      %p128 = scmp.eq.s32.totalorder %s17, 1
      %p129 = por %p127, %p128
      %p130 = scmp.ne.s32.totalorder %s119, %s120
      %p131 = scmp.eq.s32.totalorder %s17, 0
      %p132 = por %p130, %p131
      %p133 = scmp.ne.s32.totalorder %s119, %s120
      %p134 = scmp.eq.s32.totalorder %s18, 1
      %p135 = por %p133, %p134
      %p137 = scmp.ne.s32.totalorder %s120, %s136
      %p138 = scmp.eq.s32.totalorder %s18, 0
      %p139 = por %p137, %p138
      %p140 = scmp.le.s32.totalorder 1, %s12
      %p141 = scmp.lt.s32.totalorder %s12, 3
      %p142 = pnand %p140, %p141
      %p143 = pneg %p142
      // Predicated region
      $region9: #{tpu_custom_call.1} parent=5 // pred_check
        _
      $region10: #{tpu_custom_call.1} parent=5 // pred_check_branch
        %145 = sbr.rel (%p142) target = $region12
      $region11: #{tpu_custom_call.1} parent=5 // pred_region
        %s146 = ssub.s32 %s12, 1
        // Predicated region
        $region13: #{tpu_custom_call.1} parent=11 // pred_check
          %p147 = pneg %p78
        $region14: #{tpu_custom_call.1} parent=11 // pred_check_branch
          %149 = sbr.rel (%p147) target = $region16
        $region15: #{tpu_custom_call.1} parent=11 // pred_region
          %p150 = scmp.lt.s32.totalorder %s22, 0
          %s151 = scalar_select %p150, %s22, 0
          %s152 = smul.addr %s151, 8
          %s153 = scalar_lea.vmem %s1, %s152
        $region16: #{tpu_custom_call.1} parent=11 // pred_fallthru
          _
        // Predicated region
        $region17: #{tpu_custom_call.1} parent=11 // pred_check
          %p154 = pneg %p104
        $region18: #{tpu_custom_call.1} parent=11 // pred_check_branch
          %156 = sbr.rel (%p154) target = $region20
        $region19: #{tpu_custom_call.1} parent=11 // pred_region
          %p157 = scmp.lt.s32.totalorder %s22, 0
          %s158 = scalar_select %p157, %s22, 0
          %s159 = scalar_lea.vmem %s2, %s158
        $region20: #{tpu_custom_call.1} parent=11 // pred_fallthru
          _
      $region12: #{tpu_custom_call.1} parent=5 // pred_fallthru
        _
      %p160 = scmp.lt.s32.totalorder %s12, 2
      // Predicated region
      $region21: #{tpu_custom_call.1} parent=5 // pred_check
        %p161 = pneg %p160
      $region22: #{tpu_custom_call.1} parent=5 // pred_check_branch
        %163 = sbr.rel (%p161) target = $region24
      $region23: #{tpu_custom_call.1} parent=5 // pred_region
        // Predicated region
        $region25: #{tpu_custom_call.1} parent=23 // pred_check
          %p164 = pneg %p46
        $region26: #{tpu_custom_call.1} parent=23 // pred_check_branch
          %166 = sbr.rel (%p164) target = $region28
        $region27: #{tpu_custom_call.1} parent=23 // pred_region
          %p167 = scmp.lt.s32.totalorder %s19, 1
          %s168 = scalar_select %p167, %s19, 1
          %p169 = scmp.lt.s32.totalorder %s20, 0
          %s170 = scalar_select %p169, %s20, 0
          %s171 = smul.addr %s168, 20
          %s172 = sadd.s32 %s170, %s171
          %s173 = smul.addr %s172, 8
          %s174 = scalar_lea.vmem %s0, %s173
        $region28: #{tpu_custom_call.1} parent=23 // pred_fallthru
          _
      $region24: #{tpu_custom_call.1} parent=5 // pred_fallthru
        _
      %p175 = scmp.le.s32.totalorder 1, %s12
      %p176 = scmp.lt.s32.totalorder %s12, 3
      %p177 = pnand %p175, %p176
      %p178 = pneg %p177
      // Predicated region
      $region29: #{tpu_custom_call.1} parent=5 // pred_check
        _
      $region30: #{tpu_custom_call.1} parent=5 // pred_check_branch
        %180 = sbr.rel (%p177) target = $region32
      $region31: #{tpu_custom_call.1} parent=5 // pred_region
        %s181 = ssub.s32 %s12, 1
        %p182 = scmp.lt.s32.totalorder %s21, 1
        %s183 = scalar_select %p182, %s21, 1
        %p184 = scmp.lt.s32.totalorder %s22, 0
        %s185 = scalar_select %p184, %s22, 0
        %s186 = smul.addr %s183, 20
        %s187 = sadd.s32 %s185, %s186
        %s188 = smul.addr %s187, 8
        %s189 = scalar_lea.vmem %s0, %s188
        %p190 = pneg %p52
        %p191 = pneg %p49
        %p192 = scmp.lt.s32.totalorder %s22, 0
        %s193 = scalar_select %p192, %s22, 0
        %s194 = smul.addr %s193, 8
        %s195 = scalar_lea.vmem %s1, %s194
        %p196 = pneg %p78
        %p197 = pneg %p75
        %p198 = scmp.lt.s32.totalorder %s22, 0
        %s199 = scalar_select %p198, %s22, 0
        %s200 = scalar_lea.vmem %s2, %s199
        %p201 = pneg %p104
        %p202 = pneg %p101
        %p203 = pneg %p132
        %p204 = pneg %p129
        %s205 = sand.u32 %s119, 1
        %s206 = scalar_lea.sflag [#allocation3], %s205
        %s207 = sand.u32 %s119, 1
        %s208 = smul.addr %s207, 64
        %s209 = scalar_lea.vmem [#allocation2], %s208
        %p210 = scmp.lt.s32.totalorder %s21, 1
        %s211 = scalar_select %p210, %s21, 1
        %p212 = scmp.lt.s32.totalorder %s22, 0
        %s213 = scalar_select %p212, %s22, 0
        %s214 = smul.addr %s211, 20
        %s215 = sadd.s32 %s213, %s214
        %s216 = smul.addr %s215, 8
        %s217 = scalar_lea.vmem %s0, %s216
        %p218 = scmp.lt.s32.totalorder %s22, 0
        %s219 = scalar_select %p218, %s22, 0
        %s220 = smul.addr %s219, 8
        %s221 = scalar_lea.vmem %s1, %s220
        %p222 = scmp.lt.s32.totalorder %s22, 0
        %s223 = scalar_select %p222, %s22, 0
        %s224 = scalar_lea.vmem %s2, %s223
        %v225 = vld [vmem:[%s217] sm:$0xff]
        %v226 = vld [vmem:[%s217 + $0x8] sm:$0x3]
        %v227 = vld [vmem:[%s217 + $0x10] sm:$0xff]
        %v228 = vld [vmem:[%s217 + $0x18] sm:$0x3]
        %v229 = vld [vmem:[%s217 + $0x20] sm:$0xff]
        %v230 = vld [vmem:[%s217 + $0x28] sm:$0x3]
        %v231 = vld [vmem:[%s217 + $0x30] sm:$0xff]
        %v232 = vld [vmem:[%s217 + $0x38] sm:$0x3]
        %v233 = vld [vmem:[%s217 + $0x40] sm:$0xff]
        %v234 = vld [vmem:[%s217 + $0x48] sm:$0x3]
        %v235 = vld [vmem:[%s217 + $0x50] sm:$0xff]
        %v236 = vld [vmem:[%s217 + $0x58] sm:$0x3]
        %v237 = vld [vmem:[%s217 + $0x60] sm:$0xff]
        %v238 = vld [vmem:[%s217 + $0x68] sm:$0x3]
        %v239 = vld [vmem:[%s217 + $0x70] sm:$0xff]
        %v240 = vld [vmem:[%s217 + $0x78] sm:$0x3]
        %v241 = vld [vmem:[%s217 + $0x80] sm:$0xff]
        %v242 = vld [vmem:[%s217 + $0x88] sm:$0x3]
        %v243 = vld [vmem:[%s217 + $0x90] sm:$0xff]
        %v244 = vld [vmem:[%s217 + $0x98] sm:$0x3]
        %v245 = vld [vmem:[%s221] sm:$0xff]
        %v246 = vld [vmem:[%s221 + $0x8] sm:$0x1]
        %v247 = vld [vmem:[%s224] sm:$0x1]
        %v249 = vlaneseq
        %v250 = vshrl.u32 %v249, 7
        %v251 = vsub.s32 0, %v250
        %v252 = vrot.slane %v247, %v251
        %v254 = vlaneseq
        %v255 = vshrl.u32 %v254, 7
        %v256 = vsub.s32 0, %v255
        %v257 = vrot.slane %v245, %v256
        %v258 = vmul.f32 %v225, %v257
        %v259 = vmul.f32 %v227, %v257
        %v260 = vmul.f32 %v229, %v257
        %v261 = vmul.f32 %v231, %v257
        %v262 = vmul.f32 %v233, %v257
        %v263 = vmul.f32 %v235, %v257
        %v264 = vmul.f32 %v237, %v257
        %v265 = vmul.f32 %v239, %v257
        %v266 = vadd.f32 %v252, %v258
        %v267 = vadd.f32 %v252, %v259
        %v268 = vadd.f32 %v252, %v260
        %v269 = vadd.f32 %v252, %v261
        %v270 = vadd.f32 %v252, %v262
        %v271 = vadd.f32 %v252, %v263
        %v272 = vadd.f32 %v252, %v264
        %v273 = vadd.f32 %v252, %v265
        %v274 = vlaneseq
        %v275 = vshrl.u32 %v274, 7
        %v276 = vsub.s32 1, %v275
        %v277 = vrot.slane %v245, %v276
        %v278 = vmul.f32 %v225, %v277
        %v279 = vmul.f32 %v226, %v277
        %v280 = vmul.f32 %v227, %v277
        %v281 = vmul.f32 %v228, %v277
        %v282 = vmul.f32 %v229, %v277
        %v283 = vmul.f32 %v230, %v277
        %v284 = vmul.f32 %v231, %v277
        %v285 = vmul.f32 %v232, %v277
        %v286 = vmul.f32 %v233, %v277
        %v287 = vmul.f32 %v234, %v277
        %v288 = vmul.f32 %v235, %v277
        %v289 = vmul.f32 %v236, %v277
        %v290 = vmul.f32 %v237, %v277
        %v291 = vmul.f32 %v238, %v277
        %v292 = vmul.f32 %v239, %v277
        %v293 = vmul.f32 %v240, %v277
        %vm310 = vcmask 1046528
        %v311 = vrot.slane %v278, 1
        %v312 = vrot.slane %v279, 1
        %v313 = vsel %vm310, %v311, %v312
        %v314 = vrot.slane %v280, 1
        %v315 = vrot.slane %v281, 1
        %v316 = vsel %vm310, %v314, %v315
        %v317 = vrot.slane %v282, 1
        %v318 = vrot.slane %v283, 1
        %v319 = vsel %vm310, %v317, %v318
        %v320 = vrot.slane %v284, 1
        %v321 = vrot.slane %v285, 1
        %v322 = vsel %vm310, %v320, %v321
        %v323 = vrot.slane %v286, 1
        %v324 = vrot.slane %v287, 1
        %v325 = vsel %vm310, %v323, %v324
        %v326 = vrot.slane %v288, 1
        %v327 = vrot.slane %v289, 1
        %v328 = vsel %vm310, %v326, %v327
        %v329 = vrot.slane %v290, 1
        %v330 = vrot.slane %v291, 1
        %v331 = vsel %vm310, %v329, %v330
        %v332 = vrot.slane %v292, 1
        %v333 = vrot.slane %v293, 1
        %v334 = vsel %vm310, %v332, %v333
        %v343 = vadd.f32 %v266, %v313
        %v344 = vadd.f32 %v267, %v316
        %v345 = vadd.f32 %v268, %v319
        %v346 = vadd.f32 %v269, %v322
        %v347 = vadd.f32 %v270, %v325
        %v348 = vadd.f32 %v271, %v328
        %v349 = vadd.f32 %v272, %v331
        %v350 = vadd.f32 %v273, %v334
        %v351 = vlaneseq
        %v352 = vshrl.u32 %v351, 7
        %v353 = vsub.s32 2, %v352
        %v354 = vrot.slane %v245, %v353
        %v355 = vmul.f32 %v225, %v354
        %v356 = vmul.f32 %v226, %v354
        %v357 = vmul.f32 %v227, %v354
        %v358 = vmul.f32 %v228, %v354
        %v359 = vmul.f32 %v229, %v354
        %v360 = vmul.f32 %v230, %v354
        %v361 = vmul.f32 %v231, %v354
        %v362 = vmul.f32 %v232, %v354
        %v363 = vmul.f32 %v233, %v354
        %v364 = vmul.f32 %v234, %v354
        %v365 = vmul.f32 %v235, %v354
        %v366 = vmul.f32 %v236, %v354
        %v367 = vmul.f32 %v237, %v354
        %v368 = vmul.f32 %v238, %v354
        %v369 = vmul.f32 %v239, %v354
        %v370 = vmul.f32 %v240, %v354
        %vm387 = vcmask 1045504
        %v388 = vrot.slane %v355, 2
        %v389 = vrot.slane %v356, 2
        %v390 = vsel %vm387, %v388, %v389
        %v391 = vrot.slane %v357, 2
        %v392 = vrot.slane %v358, 2
        %v393 = vsel %vm387, %v391, %v392
        %v394 = vrot.slane %v359, 2
        %v395 = vrot.slane %v360, 2
        %v396 = vsel %vm387, %v394, %v395
        %v397 = vrot.slane %v361, 2
        %v398 = vrot.slane %v362, 2
        %v399 = vsel %vm387, %v397, %v398
        %v400 = vrot.slane %v363, 2
        %v401 = vrot.slane %v364, 2
        %v402 = vsel %vm387, %v400, %v401
        %v403 = vrot.slane %v365, 2
        %v404 = vrot.slane %v366, 2
        %v405 = vsel %vm387, %v403, %v404
        %v406 = vrot.slane %v367, 2
        %v407 = vrot.slane %v368, 2
        %v408 = vsel %vm387, %v406, %v407
        %v409 = vrot.slane %v369, 2
        %v410 = vrot.slane %v370, 2
        %v411 = vsel %vm387, %v409, %v410
        %v420 = vadd.f32 %v343, %v390
        %v421 = vadd.f32 %v344, %v393
        %v422 = vadd.f32 %v345, %v396
        %v423 = vadd.f32 %v346, %v399
        %v424 = vadd.f32 %v347, %v402
        %v425 = vadd.f32 %v348, %v405
        %v426 = vadd.f32 %v349, %v408
        %v427 = vadd.f32 %v350, %v411
        %v428 = vlaneseq
        %v429 = vshrl.u32 %v428, 7
        %v430 = vsub.s32 3, %v429
        %v431 = vrot.slane %v245, %v430
        %v432 = vmul.f32 %v227, %v431
        %v433 = vmul.f32 %v229, %v431
        %v434 = vmul.f32 %v231, %v431
        %v435 = vmul.f32 %v233, %v431
        %v436 = vmul.f32 %v235, %v431
        %v437 = vmul.f32 %v237, %v431
        %v438 = vmul.f32 %v239, %v431
        %v439 = vmul.f32 %v241, %v431
        %v440 = vadd.f32 %v420, %v432
        %v441 = vadd.f32 %v421, %v433
        %v442 = vadd.f32 %v422, %v434
        %v443 = vadd.f32 %v423, %v435
        %v444 = vadd.f32 %v424, %v436
        %v445 = vadd.f32 %v425, %v437
        %v446 = vadd.f32 %v426, %v438
        %v447 = vadd.f32 %v427, %v439
        %v448 = vlaneseq
        %v449 = vshrl.u32 %v448, 7
        %v450 = vsub.s32 4, %v449
        %v451 = vrot.slane %v245, %v450
        %v452 = vmul.f32 %v227, %v451
        %v453 = vmul.f32 %v228, %v451
        %v454 = vmul.f32 %v229, %v451
        %v455 = vmul.f32 %v230, %v451
        %v456 = vmul.f32 %v231, %v451
        %v457 = vmul.f32 %v232, %v451
        %v458 = vmul.f32 %v233, %v451
        %v459 = vmul.f32 %v234, %v451
        %v460 = vmul.f32 %v235, %v451
        %v461 = vmul.f32 %v236, %v451
        %v462 = vmul.f32 %v237, %v451
        %v463 = vmul.f32 %v238, %v451
        %v464 = vmul.f32 %v239, %v451
        %v465 = vmul.f32 %v240, %v451
        %v466 = vmul.f32 %v241, %v451
        %v467 = vmul.f32 %v242, %v451
        %v484 = vrot.slane %v452, 1
        %v485 = vrot.slane %v453, 1
        %v486 = vsel %vm310, %v484, %v485
        %v487 = vrot.slane %v454, 1
        %v488 = vrot.slane %v455, 1
        %v489 = vsel %vm310, %v487, %v488
        %v490 = vrot.slane %v456, 1
        %v491 = vrot.slane %v457, 1
        %v492 = vsel %vm310, %v490, %v491
        %v493 = vrot.slane %v458, 1
        %v494 = vrot.slane %v459, 1
        %v495 = vsel %vm310, %v493, %v494
        %v496 = vrot.slane %v460, 1
        %v497 = vrot.slane %v461, 1
        %v498 = vsel %vm310, %v496, %v497
        %v499 = vrot.slane %v462, 1
        %v500 = vrot.slane %v463, 1
        %v501 = vsel %vm310, %v499, %v500
        %v502 = vrot.slane %v464, 1
        %v503 = vrot.slane %v465, 1
        %v504 = vsel %vm310, %v502, %v503
        %v505 = vrot.slane %v466, 1
        %v506 = vrot.slane %v467, 1
        %v507 = vsel %vm310, %v505, %v506
        %v516 = vadd.f32 %v440, %v486
        %v517 = vadd.f32 %v441, %v489
        %v518 = vadd.f32 %v442, %v492
        %v519 = vadd.f32 %v443, %v495
        %v520 = vadd.f32 %v444, %v498
        %v521 = vadd.f32 %v445, %v501
        %v522 = vadd.f32 %v446, %v504
        %v523 = vadd.f32 %v447, %v507
        %v524 = vlaneseq
        %v525 = vshrl.u32 %v524, 7
        %v526 = vsub.s32 5, %v525
        %v527 = vrot.slane %v245, %v526
        %v528 = vmul.f32 %v227, %v527
        %v529 = vmul.f32 %v228, %v527
        %v530 = vmul.f32 %v229, %v527
        %v531 = vmul.f32 %v230, %v527
        %v532 = vmul.f32 %v231, %v527
        %v533 = vmul.f32 %v232, %v527
        %v534 = vmul.f32 %v233, %v527
        %v535 = vmul.f32 %v234, %v527
        %v536 = vmul.f32 %v235, %v527
        %v537 = vmul.f32 %v236, %v527
        %v538 = vmul.f32 %v237, %v527
        %v539 = vmul.f32 %v238, %v527
        %v540 = vmul.f32 %v239, %v527
        %v541 = vmul.f32 %v240, %v527
        %v542 = vmul.f32 %v241, %v527
        %v543 = vmul.f32 %v242, %v527
        %v560 = vrot.slane %v528, 2
        %v561 = vrot.slane %v529, 2
        %v562 = vsel %vm387, %v560, %v561
        %v563 = vrot.slane %v530, 2
        %v564 = vrot.slane %v531, 2
        %v565 = vsel %vm387, %v563, %v564
        %v566 = vrot.slane %v532, 2
        %v567 = vrot.slane %v533, 2
        %v568 = vsel %vm387, %v566, %v567
        %v569 = vrot.slane %v534, 2
        %v570 = vrot.slane %v535, 2
        %v571 = vsel %vm387, %v569, %v570
        %v572 = vrot.slane %v536, 2
        %v573 = vrot.slane %v537, 2
        %v574 = vsel %vm387, %v572, %v573
        %v575 = vrot.slane %v538, 2
        %v576 = vrot.slane %v539, 2
        %v577 = vsel %vm387, %v575, %v576
        %v578 = vrot.slane %v540, 2
        %v579 = vrot.slane %v541, 2
        %v580 = vsel %vm387, %v578, %v579
        %v581 = vrot.slane %v542, 2
        %v582 = vrot.slane %v543, 2
        %v583 = vsel %vm387, %v581, %v582
        %v592 = vadd.f32 %v516, %v562
        %v593 = vadd.f32 %v517, %v565
        %v594 = vadd.f32 %v518, %v568
        %v595 = vadd.f32 %v519, %v571
        %v596 = vadd.f32 %v520, %v574
        %v597 = vadd.f32 %v521, %v577
        %v598 = vadd.f32 %v522, %v580
        %v599 = vadd.f32 %v523, %v583
        %v600 = vlaneseq
        %v601 = vshrl.u32 %v600, 7
        %v602 = vsub.s32 6, %v601
        %v603 = vrot.slane %v245, %v602
        %v604 = vmul.f32 %v229, %v603
        %v605 = vmul.f32 %v231, %v603
        %v606 = vmul.f32 %v233, %v603
        %v607 = vmul.f32 %v235, %v603
        %v608 = vmul.f32 %v237, %v603
        %v609 = vmul.f32 %v239, %v603
        %v610 = vmul.f32 %v241, %v603
        %v611 = vmul.f32 %v243, %v603
        %v612 = vadd.f32 %v592, %v604
        %v613 = vadd.f32 %v593, %v605
        %v614 = vadd.f32 %v594, %v606
        %v615 = vadd.f32 %v595, %v607
        %v616 = vadd.f32 %v596, %v608
        %v617 = vadd.f32 %v597, %v609
        %v618 = vadd.f32 %v598, %v610
        %v619 = vadd.f32 %v599, %v611
        %v620 = vlaneseq
        %v621 = vshrl.u32 %v620, 7
        %v622 = vsub.s32 7, %v621
        %v623 = vrot.slane %v245, %v622
        %v624 = vmul.f32 %v229, %v623
        %v625 = vmul.f32 %v230, %v623
        %v626 = vmul.f32 %v231, %v623
        %v627 = vmul.f32 %v232, %v623
        %v628 = vmul.f32 %v233, %v623
        %v629 = vmul.f32 %v234, %v623
        %v630 = vmul.f32 %v235, %v623
        %v631 = vmul.f32 %v236, %v623
        %v632 = vmul.f32 %v237, %v623
        %v633 = vmul.f32 %v238, %v623
        %v634 = vmul.f32 %v239, %v623
        %v635 = vmul.f32 %v240, %v623
        %v636 = vmul.f32 %v241, %v623
        %v637 = vmul.f32 %v242, %v623
        %v638 = vmul.f32 %v243, %v623
        %v639 = vmul.f32 %v244, %v623
        %v656 = vrot.slane %v624, 1
        %v657 = vrot.slane %v625, 1
        %v658 = vsel %vm310, %v656, %v657
        %v659 = vrot.slane %v626, 1
        %v660 = vrot.slane %v627, 1
        %v661 = vsel %vm310, %v659, %v660
        %v662 = vrot.slane %v628, 1
        %v663 = vrot.slane %v629, 1
        %v664 = vsel %vm310, %v662, %v663
        %v665 = vrot.slane %v630, 1
        %v666 = vrot.slane %v631, 1
        %v667 = vsel %vm310, %v665, %v666
        %v668 = vrot.slane %v632, 1
        %v669 = vrot.slane %v633, 1
        %v670 = vsel %vm310, %v668, %v669
        %v671 = vrot.slane %v634, 1
        %v672 = vrot.slane %v635, 1
        %v673 = vsel %vm310, %v671, %v672
        %v674 = vrot.slane %v636, 1
        %v675 = vrot.slane %v637, 1
        %v676 = vsel %vm310, %v674, %v675
        %v677 = vrot.slane %v638, 1
        %v678 = vrot.slane %v639, 1
        %v679 = vsel %vm310, %v677, %v678
        %v688 = vadd.f32 %v612, %v658
        %v689 = vadd.f32 %v613, %v661
        %v690 = vadd.f32 %v614, %v664
        %v691 = vadd.f32 %v615, %v667
        %v692 = vadd.f32 %v616, %v670
        %v693 = vadd.f32 %v617, %v673
        %v694 = vadd.f32 %v618, %v676
        %v695 = vadd.f32 %v619, %v679
        %v696 = vlaneseq
        %v697 = vshrl.u32 %v696, 7
        %v698 = vsub.s32 0, %v697
        %v699 = vrot.slane %v246, %v698
        %v700 = vmul.f32 %v229, %v699
        %v701 = vmul.f32 %v230, %v699
        %v702 = vmul.f32 %v231, %v699
        %v703 = vmul.f32 %v232, %v699
        %v704 = vmul.f32 %v233, %v699
        %v705 = vmul.f32 %v234, %v699
        %v706 = vmul.f32 %v235, %v699
        %v707 = vmul.f32 %v236, %v699
        %v708 = vmul.f32 %v237, %v699
        %v709 = vmul.f32 %v238, %v699
        %v710 = vmul.f32 %v239, %v699
        %v711 = vmul.f32 %v240, %v699
        %v712 = vmul.f32 %v241, %v699
        %v713 = vmul.f32 %v242, %v699
        %v714 = vmul.f32 %v243, %v699
        %v715 = vmul.f32 %v244, %v699
        %v732 = vrot.slane %v700, 2
        %v733 = vrot.slane %v701, 2
        %v734 = vsel %vm387, %v732, %v733
        %v735 = vrot.slane %v702, 2
        %v736 = vrot.slane %v703, 2
        %v737 = vsel %vm387, %v735, %v736
        %v738 = vrot.slane %v704, 2
        %v739 = vrot.slane %v705, 2
        %v740 = vsel %vm387, %v738, %v739
        %v741 = vrot.slane %v706, 2
        %v742 = vrot.slane %v707, 2
        %v743 = vsel %vm387, %v741, %v742
        %v744 = vrot.slane %v708, 2
        %v745 = vrot.slane %v709, 2
        %v746 = vsel %vm387, %v744, %v745
        %v747 = vrot.slane %v710, 2
        %v748 = vrot.slane %v711, 2
        %v749 = vsel %vm387, %v747, %v748
        %v750 = vrot.slane %v712, 2
        %v751 = vrot.slane %v713, 2
        %v752 = vsel %vm387, %v750, %v751
        %v753 = vrot.slane %v714, 2
        %v754 = vrot.slane %v715, 2
        %v755 = vsel %vm387, %v753, %v754
        %v764 = vadd.f32 %v688, %v734
        %v765 = vadd.f32 %v689, %v737
        %v766 = vadd.f32 %v690, %v740
        %v767 = vadd.f32 %v691, %v743
        %v768 = vadd.f32 %v692, %v746
        %v769 = vadd.f32 %v693, %v749
        %v770 = vadd.f32 %v694, %v752
        %v771 = vadd.f32 %v695, %v755
        %772 = vst [vmem:[%s209] sm:$0xff] %v764
        %773 = vst [vmem:[%s209 + $0x8] sm:$0xff] %v765
        %774 = vst [vmem:[%s209 + $0x10] sm:$0xff] %v766
        %775 = vst [vmem:[%s209 + $0x18] sm:$0xff] %v767
        %776 = vst [vmem:[%s209 + $0x20] sm:$0xff] %v768
        %777 = vst [vmem:[%s209 + $0x28] sm:$0xff] %v769
        %778 = vst [vmem:[%s209 + $0x30] sm:$0xff] %v770
        %779 = vst [vmem:[%s209 + $0x38] sm:$0xff] %v771
        %s780 = sand.u32 %s119, 1
        %s781 = scalar_lea.sflag [#allocation3], %s780
        %s782 = sand.u32 %s119, 1
        %s783 = smul.addr %s782, 64
        %s784 = scalar_lea.vmem [#allocation2], %s783
        // Predicated region
        $region33: #{tpu_custom_call.1} parent=31 // pred_check
          %p785 = pneg %p129
        $region34: #{tpu_custom_call.1} parent=31 // pred_check_branch
          %787 = sbr.rel (%p785) target = $region36
        $region35: #{tpu_custom_call.1} parent=31 // pred_region
          %s789 = ssub.s32 1024, 1024
          %790 = vsyncadd %s781, %s789
          %s791 = smul.addr %s21, 8
          %s792 = sadd.s32 %s22, %s791
          %s793 = smul.addr %s792, 128
          %s794 = scalar_lea.hbm %s3, %s793
          %s795 = sshll.u32 %s784, 4
          %s796 = int_to_ptr.vmem [resolvable:$true] %s795
          %801 = dma.vmem_to_hbm [thread:$0]  %s796, 1024, %s794, %s781, 128, 128, 8
        $region36: #{tpu_custom_call.1} parent=31 // pred_fallthru
          _
      $region32: #{tpu_custom_call.1} parent=5 // pred_fallthru
        _
      %p802 = scmp.le.s32.totalorder 2, %s12
      // Predicated region
      $region37: #{tpu_custom_call.1} parent=5 // pred_check
        %p803 = pneg %p802
      $region38: #{tpu_custom_call.1} parent=5 // pred_check_branch
        %805 = sbr.rel (%p803) target = $region40
      $region39: #{tpu_custom_call.1} parent=5 // pred_region
        %s806 = ssub.s32 %s12, 2
        // Predicated region
        $region41: #{tpu_custom_call.1} parent=39 // pred_check
          %p807 = pneg %p135
        $region42: #{tpu_custom_call.1} parent=39 // pred_check_branch
          %809 = sbr.rel (%p807) target = $region44
        $region43: #{tpu_custom_call.1} parent=39 // pred_region
          %s810 = sand.u32 %s120, 1
          %s811 = scalar_lea.sflag [#allocation3], %s810
          %s812 = sand.u32 %s120, 1
          %s813 = smul.addr %s812, 64
          %s814 = scalar_lea.vmem [#allocation2], %s813
          %815 = dma.done %s811, 1024
        $region44: #{tpu_custom_call.1} parent=39 // pred_fallthru
          _
      $region40: #{tpu_custom_call.1} parent=5 // pred_fallthru
        _
    $region6: #{tpu_custom_call.1} parent=1 // loop_footer
      %s16 = sadd.s32 1, %s12
    $region7: #{tpu_custom_call.1} parent=1 // loop_footer_branch
      %11 = sbr.rel target = $region3
    $region8: #{tpu_custom_call.1} parent=1 // loop_exit
      _
    %816 = vsyncpa [#allocation3], 1
    %s817 = scalar_lea.sflag [#allocation3], 1
    %818 = vsyncpa %s817, 1

</llo_original>
